<compile_context>
chip_gen: v7x
topology: tpu7x:2x2x1
jax: 0.10.0
libtpu: 0.0.40
codegen_flags: <defaults>
</compile_context>

<pallas_src>
import jax
import jax.numpy as jnp
from jax import lax
from jax.experimental import pallas as pl
from jax.experimental.pallas import tpu as pltpu

MAX_ACTION = 1.0
HIDDEN = 256
TILE_B_CAP = 2048  # sized against v7x's 64 MiB VMEM (also fine on v5e/v6e)


def actor_kernel(x_ref, w1_ref, b1_ref, w2_ref, b2_ref, wh_ref, bh_ref, out_ref):
    """One batch tile. x/weights are bf16 (MXU operands); accumulation and all
    element-wise math are f32. Output is packed [tile_b, 2*outp] = mean|std."""
    outp = out_ref.shape[-1] // 2

    x = x_ref[...]  # bf16 [tile_b, inp]

    # Layer 1: Linear(inp, 256) + ReLU (bias/activation in f32)
    h1 = jnp.dot(x, w1_ref[...], preferred_element_type=jnp.float32) + b1_ref[...]
    h1 = jnp.maximum(h1, 0.0)

    # Layer 2: Linear(256, 256) + ReLU
    h2 = jnp.dot(h1.astype(jnp.bfloat16), w2_ref[...],
                 preferred_element_type=jnp.float32) + b2_ref[...]
    h2 = jnp.maximum(h2, 0.0)

    # Fused heads: one matmul for [mean_logits | log_std], [tile_b, 2*outp]
    head = jnp.dot(h2.astype(jnp.bfloat16), wh_ref[...],
                   preferred_element_type=jnp.float32) + bh_ref[...]

    # Apply both nonlinearities on the full lane block, then lane-select.
    mean_part = MAX_ACTION * jnp.tanh(head)
    std_part = jnp.exp(jnp.clip(head, -20.0, 2.0))
    col = lax.broadcasted_iota(jnp.int32, head.shape, 1)
    out_ref[...] = jnp.where(col < outp, mean_part, std_part)


def actor_forward(x, params, tile_b_cap=TILE_B_CAP):
    """x: [B, inp] float32. params: dict of f32 weights/biases.
    Returns (mean, std), both [B, outp] float32."""
    B, inp = x.shape
    outp = params["wm"].shape[1]
    outp2 = 2 * outp

    # MXU operands in bf16 (halves weight DMA bytes, 2-3x fewer MXU passes).
    xb = x.astype(jnp.bfloat16)
    w1 = params["w1"].astype(jnp.bfloat16)
    w2 = params["w2"].astype(jnp.bfloat16)
    # Fused head weights / biases: [256, 2*outp], [1, 2*outp].
    wh = jnp.concatenate([params["wm"], params["ws"]], axis=1).astype(jnp.bfloat16)
    bh = jnp.concatenate([params["bm"], params["bs"]], axis=1).astype(jnp.float32)
    b1 = params["b1"].astype(jnp.float32)
    b2 = params["b2"].astype(jnp.float32)

    # Batch tile: full batch if small, else a VMEM-safe multiple of 8.
    tile_b = B if B <= tile_b_cap else tile_b_cap
    grid = (pl.cdiv(B, tile_b),)

    def resident(arr):
        # Weights/biases: same (whole-array) block at every grid step ->
        # fetched once, stay resident in VMEM.
        return pl.BlockSpec(arr.shape, lambda i: (0, 0))

    flops = 2 * B * (inp * HIDDEN + HIDDEN * HIDDEN + HIDDEN * outp2)
    bytes_accessed = (xb.size * 2
                      + (w1.size + w2.size + wh.size) * 2
                      + (b1.size + b2.size + bh.size) * 4
                      + B * outp2 * 4)

    packed = pl.pallas_call(
        actor_kernel,
        out_shape=jax.ShapeDtypeStruct((B, outp2), jnp.float32),
        grid=grid,
        in_specs=[
            pl.BlockSpec((tile_b, inp), lambda i: (i, 0)),   # x: tiled over batch
            resident(w1), resident(b1),
            resident(w2), resident(b2),
            resident(wh), resident(bh),
        ],
        out_specs=pl.BlockSpec((tile_b, outp2), lambda i: (i, 0)),
        compiler_params=pltpu.CompilerParams(
            dimension_semantics=("parallel",),      # 2x on v7x megacore
            vmem_limit_bytes=64 * 1024 * 1024,
        ),
        cost_estimate=pl.CostEstimate(
            flops=flops,
            transcendentals=2 * B * outp2,
            bytes_accessed=bytes_accessed,
        ),
    )(xb, w1, b1, w2, b2, wh, bh)

    return packed[:, :outp], packed[:, outp:]


def init_params(key, inp, outp):
    """Deterministic init mirroring the PyTorch module:
    weights ~ N(0, 0.1), biases ~ U(-1/sqrt(fan_in), 1/sqrt(fan_in))
    (default nn.Linear bias init).  Weights stored [in, out] (transposed vs torch)."""
    ks = jax.random.split(key, 8)

    def w(k, fan_in, fan_out):
        return (0.1 * jax.random.normal(k, (fan_in, fan_out))).astype(jnp.float32)

    def b(k, fan_in, fan_out):
        bound = 1.0 / jnp.sqrt(jnp.float32(fan_in))
        return jax.random.uniform(k, (1, fan_out), minval=-bound, maxval=bound).astype(jnp.float32)

    return {
        "w1": w(ks[0], inp, HIDDEN),    "b1": b(ks[1], inp, HIDDEN),
        "w2": w(ks[2], HIDDEN, HIDDEN), "b2": b(ks[3], HIDDEN, HIDDEN),
        "wm": w(ks[4], HIDDEN, outp),   "bm": b(ks[5], HIDDEN, outp),
        "ws": w(ks[6], HIDDEN, outp),   "bs": b(ks[7], HIDDEN, outp),
    }


def actor_ref(x, p):
    """Pure-JAX f32 reference for correctness check."""
    h1 = jnp.maximum(x @ p["w1"] + p["b1"], 0.0)
    h2 = jnp.maximum(h1 @ p["w2"] + p["b2"], 0.0)
    mean = MAX_ACTION * jnp.tanh(h2 @ p["wm"] + p["bm"])
    std = jnp.exp(jnp.clip(h2 @ p["ws"] + p["bs"], -20.0, 2.0))
    return mean, std


if __name__ == "__main__":
    B, INP, OUTP = 8, 16, 8   # small shapes consistent with the module
    key = jax.random.PRNGKey(0)
    k_x, k_p = jax.random.split(key)

    x = jax.random.normal(k_x, (B, INP), dtype=jnp.float32)
    params = init_params(k_p, INP, OUTP)

    mean, std = actor_forward(x, params)
    mean, std = jax.block_until_ready((mean, std))

    mean_f32, std_f32 = actor_ref(x, params)
    assert mean.shape == (B, OUTP) and std.shape == (B, OUTP)
    # Relaxed tolerance: kernel uses bf16 MXU operands with f32 accumulation.
    assert jnp.allclose(mean, mean_f32, atol=2e-2, rtol=2e-2)
    assert jnp.allclose(std, std_f32, atol=2e-2, rtol=2e-2)
    assert bool(jnp.all(std > 0.0))

    print("KERNEL_OK")
</pallas_src>

<mosaic_0001>
module attributes {stable_mosaic.version = 11 : i64} {
  func.func @actor_kernel(%arg0: i32, %arg1: memref<8x16xbf16, #tpu.memory_space<vmem>>, %arg2: memref<16x256xbf16, #tpu.memory_space<vmem>>, %arg3: memref<1x256xf32, #tpu.memory_space<vmem>>, %arg4: memref<256x256xbf16, #tpu.memory_space<vmem>>, %arg5: memref<1x256xf32, #tpu.memory_space<vmem>>, %arg6: memref<256x16xbf16, #tpu.memory_space<vmem>>, %arg7: memref<1x16xf32, #tpu.memory_space<vmem>>, %arg8: memref<8x16xf32, #tpu.memory_space<vmem>>) attributes {dimension_semantics = [#tpu.dimension_semantics<parallel>], iteration_bounds = array<i64: 1>, scalar_prefetch = 0 : i64, scratch_operands = 0 : i64, tpu.core_type = #tpu.core_type<tc>, window_params = [{transform_indices = @transform_0, window_bounds = array<i64: 8, 16>}, {pipeline_mode = #tpu.pipeline_mode<synchronous>, transform_indices = @transform_1, window_bounds = array<i64: 16, 256>}, {pipeline_mode = #tpu.pipeline_mode<synchronous>, transform_indices = @transform_2, window_bounds = array<i64: 1, 256>}, {pipeline_mode = #tpu.pipeline_mode<synchronous>, transform_indices = @transform_3, window_bounds = array<i64: 256, 256>}, {pipeline_mode = #tpu.pipeline_mode<synchronous>, transform_indices = @transform_4, window_bounds = array<i64: 1, 256>}, {pipeline_mode = #tpu.pipeline_mode<synchronous>, transform_indices = @transform_5, window_bounds = array<i64: 256, 16>}, {pipeline_mode = #tpu.pipeline_mode<synchronous>, transform_indices = @transform_6, window_bounds = array<i64: 1, 16>}, {transform_indices = @transform_7, window_bounds = array<i64: 8, 16>}]} {
    %c0 = arith.constant 0 : index
    %c0_0 = arith.constant 0 : index
    %0 = vector.load %arg1[%c0, %c0_0] : memref<8x16xbf16, #tpu.memory_space<vmem>>, vector<8x16xbf16>
    %c0_1 = arith.constant 0 : index
    %c0_2 = arith.constant 0 : index
    %1 = vector.load %arg2[%c0_1, %c0_2] : memref<16x256xbf16, #tpu.memory_space<vmem>>, vector<16x256xbf16>
    %cst = arith.constant dense<0.000000e+00> : vector<8x256xf32>
    %2 = tpu.matmul %0, %1, %cst {dimension_numbers = #tpu.dot_dimension_numbers<[1], [0], [0], [1], [0, 0, 1, 1], [], []>} : vector<8x16xbf16>, vector<16x256xbf16>, vector<8x256xf32> -> vector<8x256xf32>
    %c0_3 = arith.constant 0 : index
    %c0_4 = arith.constant 0 : index
    %3 = vector.load %arg3[%c0_3, %c0_4] : memref<1x256xf32, #tpu.memory_space<vmem>>, vector<1x256xf32>
    %4 = vector.broadcast %3 : vector<1x256xf32> to vector<8x256xf32>
    %5 = arith.addf %2, %4 : vector<8x256xf32>
    %cst_5 = arith.constant 0.000000e+00 : f32
    %6 = vector.broadcast %cst_5 : f32 to vector<8x256xf32>
    %7 = arith.maximumf %5, %6 : vector<8x256xf32>
    %8 = arith.truncf %7 : vector<8x256xf32> to vector<8x256xbf16>
    %c0_6 = arith.constant 0 : index
    %c0_7 = arith.constant 0 : index
    %9 = vector.load %arg4[%c0_6, %c0_7] : memref<256x256xbf16, #tpu.memory_space<vmem>>, vector<256x256xbf16>
    %cst_8 = arith.constant dense<0.000000e+00> : vector<8x256xf32>
    %10 = tpu.matmul %8, %9, %cst_8 {dimension_numbers = #tpu.dot_dimension_numbers<[1], [0], [0], [1], [0, 0, 1, 1], [], []>} : vector<8x256xbf16>, vector<256x256xbf16>, vector<8x256xf32> -> vector<8x256xf32>
    %c0_9 = arith.constant 0 : index
    %c0_10 = arith.constant 0 : index
    %11 = vector.load %arg5[%c0_9, %c0_10] : memref<1x256xf32, #tpu.memory_space<vmem>>, vector<1x256xf32>
    %12 = vector.broadcast %11 : vector<1x256xf32> to vector<8x256xf32>
    %13 = arith.addf %10, %12 : vector<8x256xf32>
    %cst_11 = arith.constant 0.000000e+00 : f32
    %14 = vector.broadcast %cst_11 : f32 to vector<8x256xf32>
    %15 = arith.maximumf %13, %14 : vector<8x256xf32>
    %16 = arith.truncf %15 : vector<8x256xf32> to vector<8x256xbf16>
    %c0_12 = arith.constant 0 : index
    %c0_13 = arith.constant 0 : index
    %17 = vector.load %arg6[%c0_12, %c0_13] : memref<256x16xbf16, #tpu.memory_space<vmem>>, vector<256x16xbf16>
    %cst_14 = arith.constant dense<0.000000e+00> : vector<8x16xf32>
    %18 = tpu.matmul %16, %17, %cst_14 {dimension_numbers = #tpu.dot_dimension_numbers<[1], [0], [0], [1], [0, 0, 1, 1], [], []>} : vector<8x256xbf16>, vector<256x16xbf16>, vector<8x16xf32> -> vector<8x16xf32>
    %c0_15 = arith.constant 0 : index
    %c0_16 = arith.constant 0 : index
    %19 = vector.load %arg7[%c0_15, %c0_16] : memref<1x16xf32, #tpu.memory_space<vmem>>, vector<1x16xf32>
    %20 = vector.broadcast %19 : vector<1x16xf32> to vector<8x16xf32>
    %21 = arith.addf %18, %20 : vector<8x16xf32>
    %22 = math.tanh %21 : vector<8x16xf32>
    %cst_17 = arith.constant 1.000000e+00 : f32
    %23 = vector.broadcast %cst_17 : f32 to vector<8x16xf32>
    %24 = arith.mulf %23, %22 : vector<8x16xf32>
    %cst_18 = arith.constant -2.000000e+01 : f32
    %cst_19 = arith.constant 2.000000e+00 : f32
    %25 = vector.broadcast %cst_18 : f32 to vector<8x16xf32>
    %26 = arith.maximumf %25, %21 : vector<8x16xf32>
    %27 = vector.broadcast %cst_19 : f32 to vector<8x16xf32>
    %28 = arith.minimumf %27, %26 : vector<8x16xf32>
    %29 = math.exp %28 : vector<8x16xf32>
    %30 = tpu.iota {dimensions = array<i32: 1>} : vector<8x16xi32>
    %c8_i32 = arith.constant 8 : i32
    %31 = vector.broadcast %c8_i32 : i32 to vector<8x16xi32>
    %32 = arith.cmpi slt, %30, %31 : vector<8x16xi32>
    %33 = arith.select %32, %24, %29 : vector<8x16xi1>, vector<8x16xf32>
    %c0_20 = arith.constant 0 : index
    %c0_21 = arith.constant 0 : index
    %34 = vector.load %arg8[%c0_20, %c0_21] : memref<8x16xf32, #tpu.memory_space<vmem>>, vector<8x16xf32>
    tpu.vector_store %arg8[%c0_20, %c0_21], %33 {strides = array<i32>} : memref<8x16xf32, #tpu.memory_space<vmem>>, vector<8x16xf32>,
    return
  }
  func.func @transform_0(%arg0: i32) -> (i32, i32) {
    %c0_i32 = arith.constant 0 : i32
    %c0_i32_0 = arith.constant 0 : i32
    return %arg0, %c0_i32 : i32, i32
  }
  func.func @transform_1(%arg0: i32) -> (i32, i32) {
    %c0_i32 = arith.constant 0 : i32
    %c0_i32_0 = arith.constant 0 : i32
    %c0_i32_1 = arith.constant 0 : i32
    return %c0_i32, %c0_i32_0 : i32, i32
  }
  func.func @transform_2(%arg0: i32) -> (i32, i32) {
    %c0_i32 = arith.constant 0 : i32
    %c0_i32_0 = arith.constant 0 : i32
    %c0_i32_1 = arith.constant 0 : i32
    return %c0_i32, %c0_i32_0 : i32, i32
  }
  func.func @transform_3(%arg0: i32) -> (i32, i32) {
    %c0_i32 = arith.constant 0 : i32
    %c0_i32_0 = arith.constant 0 : i32
    %c0_i32_1 = arith.constant 0 : i32
    return %c0_i32, %c0_i32_0 : i32, i32
  }
  func.func @transform_4(%arg0: i32) -> (i32, i32) {
    %c0_i32 = arith.constant 0 : i32
    %c0_i32_0 = arith.constant 0 : i32
    %c0_i32_1 = arith.constant 0 : i32
    return %c0_i32, %c0_i32_0 : i32, i32
  }
  func.func @transform_5(%arg0: i32) -> (i32, i32) {
    %c0_i32 = arith.constant 0 : i32
    %c0_i32_0 = arith.constant 0 : i32
    %c0_i32_1 = arith.constant 0 : i32
    return %c0_i32, %c0_i32_0 : i32, i32
  }
  func.func @transform_6(%arg0: i32) -> (i32, i32) {
    %c0_i32 = arith.constant 0 : i32
    %c0_i32_0 = arith.constant 0 : i32
    %c0_i32_1 = arith.constant 0 : i32
    return %c0_i32, %c0_i32_0 : i32, i32
  }
  func.func @transform_7(%arg0: i32) -> (i32, i32) {
    %c0_i32 = arith.constant 0 : i32
    %c0_i32_0 = arith.constant 0 : i32
    return %arg0, %c0_i32 : i32, i32
  }
}

</mosaic_0001>

<llo_original>
// kernel: tpu_custom_call.1
$region0: #{tpu_custom_call.1}
  #allocation0 [shape = 'u32[]', space=smem, size = 0x4, offset = 0x4, fixed_abs, tag = 'smem constant byte address 0x4 - core index']
  #allocation1 [shape = 'u32[144,128]{1,0:T(1,128)}', space=vmem, size = 0x12000, scoped, tag = 'internal scratch']
  %s0 = inlined_call_operand.hbm [shape: bf16[8,16], index: 0, kind: input, shape index: {}]
  %s1 = inlined_call_operand.hbm [shape: bf16[16,256], index: 1, kind: input, shape index: {}]
  %s2 = inlined_call_operand.hbm [shape: f32[1,256], index: 2, kind: input, shape index: {}]
  %s3 = inlined_call_operand.hbm [shape: bf16[256,256], index: 3, kind: input, shape index: {}]
  %s4 = inlined_call_operand.hbm [shape: f32[1,256], index: 4, kind: input, shape index: {}]
  %s5 = inlined_call_operand.hbm [shape: bf16[256,16], index: 5, kind: input, shape index: {}]
  %s6 = inlined_call_operand.hbm [shape: f32[1,16], index: 6, kind: input, shape index: {}]
  %s7 = inlined_call_operand.hbm [shape: f32[8,16], index: 7, kind: output, shape index: {}]
  %s8 = sld [smem:[#allocation0]]
  $region66: #{tpu_custom_call.1} parent=0
    _
  %s10 = ssub.s32 1, %s8
  %s11 = scalar_select 0, %s10, %s8
  $region1: #{tpu_custom_call.1} parent=0
    #allocation2 [shape = 'u8[2048]{0}', space=vmem, size = 0x800, scoped, tag = 'input window, operand 0, single buffered']
    #allocation3 [shape = 's32[1]{0}', space=sflag, size = 0x4, scoped, tag = 'scoped memory for tpu_custom_call.1']
    #allocation4 [shape = 's32[1]{0}', space=sflag, size = 0x4, scoped, tag = 'scoped memory for tpu_custom_call.1']
    #allocation5 [shape = 'u8[8192]{0}', space=vmem, size = 0x2000, scoped, tag = 'input window, operand 1, single buffered']
    #allocation6 [shape = 's32[1]{0}', space=sflag, size = 0x4, scoped, tag = 'scoped memory for tpu_custom_call.1']
    #allocation7 [shape = 'u8[1024]{0}', space=vmem, size = 0x400, scoped, tag = 'input window, operand 2, single buffered']
    #allocation8 [shape = 'u8[131072]{0}', space=vmem, size = 0x20000, scoped, tag = 'input window, operand 3, single buffered']
    #allocation9 [shape = 's32[1]{0}', space=sflag, size = 0x4, scoped, tag = 'scoped memory for tpu_custom_call.1']
    #allocation10 [shape = 'u8[1024]{0}', space=vmem, size = 0x400, scoped, tag = 'input window, operand 4, single buffered']
    #allocation11 [shape = 'u8[65536]{0}', space=vmem, size = 0x10000, scoped, tag = 'input window, operand 5, single buffered']
    #allocation12 [shape = 's32[1]{0}', space=sflag, size = 0x4, scoped, tag = 'scoped memory for tpu_custom_call.1']
    #allocation13 [shape = 'u8[512]{0}', space=vmem, size = 0x400, scoped, tag = 'input window, operand 6, single buffered']
    #allocation14 [shape = 'u8[4096]{0}', space=vmem, size = 0x1000, scoped, tag = 'output window, operand 0, single buffered']
    %12 = vsyncpa [#allocation3], 0
    %13 = vsyncpa [#allocation6], 0
    %14 = vsyncpa [#allocation9], 0
    %15 = vsyncpa [#allocation12], 0
    %16 = vsyncpa [#allocation4], 0
    // Predicated region
    $region2: #{tpu_custom_call.1} parent=1 // pred_check
      _
    $region3: #{tpu_custom_call.1} parent=1 // pred_check_branch
      %18 = sbr.rel (0) target = $region5
    $region4: #{tpu_custom_call.1} parent=1 // pred_region
      %s20 = ssub.s32 64, 64
      %21 = vsyncadd [#allocation3], %s20
      %s23 = sshll.u32 [#allocation2], 4
      %s24 = int_to_ptr.vmem [resolvable:$true] %s23
      %26 = dma.hbm_to_vmem [thread:$0]  %s0, 64, %s24, [#allocation3]
    $region5: #{tpu_custom_call.1} parent=1 // pred_fallthru
      _
    // Predicated region
    $region6: #{tpu_custom_call.1} parent=1 // pred_check
      _
    $region7: #{tpu_custom_call.1} parent=1 // pred_check_branch
      %28 = sbr.rel (0) target = $region9
    $region8: #{tpu_custom_call.1} parent=1 // pred_region
      %s30 = ssub.s32 256, 256
      %31 = vsyncadd [#allocation6], %s30
      %s32 = sshll.u32 [#allocation5], 4
      %s33 = int_to_ptr.vmem [resolvable:$true] %s32
      %38 = dma.hbm_to_vmem [thread:$0]  %s1, 256, %s33, [#allocation6], 128, 128, 8
    $region9: #{tpu_custom_call.1} parent=1 // pred_fallthru
      _
    // Predicated region
    $region10: #{tpu_custom_call.1} parent=1 // pred_check
      _
    $region11: #{tpu_custom_call.1} parent=1 // pred_check_branch
      %40 = sbr.rel (0) target = $region13
    $region12: #{tpu_custom_call.1} parent=1 // pred_region
      %s42 = ssub.s32 32, 32
      %43 = vsyncadd [#allocation6], %s42
      %s45 = sshll.u32 [#allocation7], 4
      %s46 = int_to_ptr.vmem [resolvable:$true] %s45
      %48 = dma.hbm_to_vmem [thread:$0]  %s2, 32, %s46, [#allocation6]
    $region13: #{tpu_custom_call.1} parent=1 // pred_fallthru
      _
    // Predicated region
    $region14: #{tpu_custom_call.1} parent=1 // pred_check
      _
    $region15: #{tpu_custom_call.1} parent=1 // pred_check_branch
      %50 = sbr.rel (0) target = $region17
    $region16: #{tpu_custom_call.1} parent=1 // pred_region
      %s52 = ssub.s32 4096, 4096
      %53 = vsyncadd [#allocation9], %s52
      %s54 = sshll.u32 [#allocation8], 4
      %s55 = int_to_ptr.vmem [resolvable:$true] %s54
      %60 = dma.hbm_to_vmem [thread:$0]  %s3, 4096, %s55, [#allocation9], 128, 128, 8
    $region17: #{tpu_custom_call.1} parent=1 // pred_fallthru
      _
    // Predicated region
    $region18: #{tpu_custom_call.1} parent=1 // pred_check
      _
    $region19: #{tpu_custom_call.1} parent=1 // pred_check_branch
      %62 = sbr.rel (0) target = $region21
    $region20: #{tpu_custom_call.1} parent=1 // pred_region
      %s64 = ssub.s32 32, 32
      %65 = vsyncadd [#allocation9], %s64
      %s67 = sshll.u32 [#allocation10], 4
      %s68 = int_to_ptr.vmem [resolvable:$true] %s67
      %70 = dma.hbm_to_vmem [thread:$0]  %s4, 32, %s68, [#allocation9]
    $region21: #{tpu_custom_call.1} parent=1 // pred_fallthru
      _
    // Predicated region
    $region22: #{tpu_custom_call.1} parent=1 // pred_check
      _
    $region23: #{tpu_custom_call.1} parent=1 // pred_check_branch
      %72 = sbr.rel (0) target = $region25
    $region24: #{tpu_custom_call.1} parent=1 // pred_region
      %s74 = ssub.s32 2048, 2048
      %75 = vsyncadd [#allocation12], %s74
      %s76 = sshll.u32 [#allocation11], 4
      %s77 = int_to_ptr.vmem [resolvable:$true] %s76
      %82 = dma.hbm_to_vmem [thread:$0]  %s5, 2048, %s77, [#allocation12], 64, 64, 4
    $region25: #{tpu_custom_call.1} parent=1 // pred_fallthru
      _
    // Predicated region
    $region26: #{tpu_custom_call.1} parent=1 // pred_check
      _
    $region27: #{tpu_custom_call.1} parent=1 // pred_check_branch
      %84 = sbr.rel (0) target = $region29
    $region28: #{tpu_custom_call.1} parent=1 // pred_region
      %s86 = ssub.s32 16, 16
      %87 = vsyncadd [#allocation12], %s86
      %s89 = sshll.u32 [#allocation13], 4
      %s90 = int_to_ptr.vmem [resolvable:$true] %s89
      %92 = dma.hbm_to_vmem [thread:$0]  %s6, 16, %s90, [#allocation12]
    $region29: #{tpu_custom_call.1} parent=1 // pred_fallthru
      _
    // Predicated region
    $region30: #{tpu_custom_call.1} parent=1 // pred_check
      _
    $region31: #{tpu_custom_call.1} parent=1 // pred_check_branch
      %94 = sbr.rel (0) target = $region33
    $region32: #{tpu_custom_call.1} parent=1 // pred_region
      %95 = dma.done [#allocation3], 64
    $region33: #{tpu_custom_call.1} parent=1 // pred_fallthru
      _
    // Predicated region
    $region34: #{tpu_custom_call.1} parent=1 // pred_check
      _
    $region35: #{tpu_custom_call.1} parent=1 // pred_check_branch
      %97 = sbr.rel (0) target = $region37
    $region36: #{tpu_custom_call.1} parent=1 // pred_region
      %98 = dma.done [#allocation6], 256
    $region37: #{tpu_custom_call.1} parent=1 // pred_fallthru
      _
    // Predicated region
    $region38: #{tpu_custom_call.1} parent=1 // pred_check
      _
    $region39: #{tpu_custom_call.1} parent=1 // pred_check_branch
      %100 = sbr.rel (0) target = $region41
    $region40: #{tpu_custom_call.1} parent=1 // pred_region
      %101 = dma.done [#allocation6], 32
    $region41: #{tpu_custom_call.1} parent=1 // pred_fallthru
      _
    // Predicated region
    $region42: #{tpu_custom_call.1} parent=1 // pred_check
      _
    $region43: #{tpu_custom_call.1} parent=1 // pred_check_branch
      %103 = sbr.rel (0) target = $region45
    $region44: #{tpu_custom_call.1} parent=1 // pred_region
      %104 = dma.done [#allocation9], 4096
    $region45: #{tpu_custom_call.1} parent=1 // pred_fallthru
      _
    // Predicated region
    $region46: #{tpu_custom_call.1} parent=1 // pred_check
      _
    $region47: #{tpu_custom_call.1} parent=1 // pred_check_branch
      %106 = sbr.rel (0) target = $region49
    $region48: #{tpu_custom_call.1} parent=1 // pred_region
      %107 = dma.done [#allocation9], 32
    $region49: #{tpu_custom_call.1} parent=1 // pred_fallthru
      _
    // Predicated region
    $region50: #{tpu_custom_call.1} parent=1 // pred_check
      _
    $region51: #{tpu_custom_call.1} parent=1 // pred_check_branch
      %109 = sbr.rel (0) target = $region53
    $region52: #{tpu_custom_call.1} parent=1 // pred_region
      %110 = dma.done [#allocation12], 2048
    $region53: #{tpu_custom_call.1} parent=1 // pred_fallthru
      _
    // Predicated region
    $region54: #{tpu_custom_call.1} parent=1 // pred_check
      _
    $region55: #{tpu_custom_call.1} parent=1 // pred_check_branch
      %112 = sbr.rel (0) target = $region57
    $region56: #{tpu_custom_call.1} parent=1 // pred_region
      %113 = dma.done [#allocation12], 16
    $region57: #{tpu_custom_call.1} parent=1 // pred_fallthru
      _
    %v115 = vld [vmem:[#allocation2] sm:$0xf]
    %v116 = vld [vmem:[#allocation5] sm:$0xff]
    %v117 = vld [vmem:[#allocation5 + $0x8] sm:$0xff]
    %v118 = vld [vmem:[#allocation7] sm:$0x3]
    %v120 = vlaneseq
    %v121 = vshrl.u32 %v120, 7
    %v122 = vsub.s32 0, %v121
    %v123 = vrot.slane %v118, %v122
    %v124 = vlaneseq
    %v125 = vshrl.u32 %v124, 7
    %v126 = vsub.s32 1, %v125
    %v127 = vrot.slane %v118, %v126
    %v132 = vunpack.c.l.b16 %v116
    %v133 = vunpack.c.h.b16 %v116
    %v134 = vunpack.c.l.b16 %v117
    %v135 = vunpack.c.h.b16 %v117
    %v136 = vpack.c.b16 %v134, %v132
    %v137 = vpack.c.b16 %v135, %v133
    %vm140 = vcmask 130048
    %v142 = vsel %vm140, %v115, 0
    %144 = vmatprep.subr.bf16.mxu0 %v137
    %145 = vmatpush1.bf16.msra.mxu0 %v136
    %146 = vmatprep.subr.bf16.mxu0 0
    %147 = vmatpush1.bf16.msra.mxu0 0
    %148 = vmatprep.subr.bf16.mxu0 0
    %149 = vmatpush1.bf16.msra.mxu0 0
    %150 = vmatprep.subr.bf16.mxu0 0
    %151 = vmatpush1.bf16.msra.mxu0 0
    %152 = vmatprep.subr.bf16.mxu0 0
    %153 = vmatpush1.bf16.msra.mxu0 0
    %154 = vmatprep.subr.bf16.mxu0 0
    %155 = vmatpush1.bf16.msra.mxu0 0
    %156 = vmatprep.subr.bf16.mxu0 0
    %157 = vmatpush1.bf16.msra.mxu0 0
    %158 = vmatprep.subr.bf16.mxu0 0
    %159 = vmatpush1.bf16.msra.mxu0 0
    %160 = vmatprep.subr.bf16.mxu0 0
    %161 = vmatpush1.bf16.msra.mxu0 0
    %162 = vmatprep.subr.bf16.mxu0 0
    %163 = vmatpush1.bf16.msra.mxu0 0
    %164 = vmatprep.subr.bf16.mxu0 0
    %165 = vmatpush1.bf16.msra.mxu0 0
    %166 = vmatprep.subr.bf16.mxu0 0
    %167 = vmatpush1.bf16.msra.mxu0 0
    %168 = vmatprep.subr.bf16.mxu0 0
    %169 = vmatpush1.bf16.msra.mxu0 0
    %170 = vmatprep.subr.bf16.mxu0 0
    %171 = vmatpush1.bf16.msra.mxu0 0
    %172 = vmatprep.subr.bf16.mxu0 0
    %173 = vmatpush1.bf16.msra.mxu0 0
    %174 = vmatprep.subr.bf16.mxu0 0
    %175 = vmatpush1.bf16.msra.mxu0 0
    %176 = vmatprep.mubr.bf16.mxu0 0
    %177 = vmatmul.mubr.bf16.gmra.mrb[0].mxu0 %v142
    %v178 = vpop.f32.mrb[0].mxu0
    %v179 = vadd.f32 %v123, %v178
    %v180 = vpop.f32.mrb[0].mxu0
    %v181 = vadd.f32 %v127, %v180
    %v182 = vpop.f32.mrb[0].mxu0
    %v183 = vpop.f32.mrb[0].mxu0
    %184 = vdwg.mxu0
    %v185 = vmax.f32 %v179, 0.0
    %v186 = vmax.f32 %v181, 0.0
    %v187 = vpack.c.bf16 %v185, %v185
    %v188 = vpack.c.bf16 %v186, %v186
    %v189 = vld [vmem:[#allocation8] sm:$0xff]
    %v190 = vld [vmem:[#allocation8 + $0x8] sm:$0xff]
    %v191 = vld [vmem:[#allocation8 + $0x10] sm:$0xff]
    %v192 = vld [vmem:[#allocation8 + $0x18] sm:$0xff]
    %v193 = vld [vmem:[#allocation8 + $0x20] sm:$0xff]
    %v194 = vld [vmem:[#allocation8 + $0x28] sm:$0xff]
    %v195 = vld [vmem:[#allocation8 + $0x30] sm:$0xff]
    %v196 = vld [vmem:[#allocation8 + $0x38] sm:$0xff]
    %v197 = vld [vmem:[#allocation8 + $0x40] sm:$0xff]
    %v198 = vld [vmem:[#allocation8 + $0x48] sm:$0xff]
    %v199 = vld [vmem:[#allocation8 + $0x50] sm:$0xff]
    %v200 = vld [vmem:[#allocation8 + $0x58] sm:$0xff]
    %v201 = vld [vmem:[#allocation8 + $0x60] sm:$0xff]
    %v202 = vld [vmem:[#allocation8 + $0x68] sm:$0xff]
    %v203 = vld [vmem:[#allocation8 + $0x70] sm:$0xff]
    %v204 = vld [vmem:[#allocation8 + $0x78] sm:$0xff]
    %v205 = vld [vmem:[#allocation8 + $0x80] sm:$0xff]
    %v206 = vld [vmem:[#allocation8 + $0x88] sm:$0xff]
    %v207 = vld [vmem:[#allocation8 + $0x90] sm:$0xff]
    %v208 = vld [vmem:[#allocation8 + $0x98] sm:$0xff]
    %v209 = vld [vmem:[#allocation8 + $0xa0] sm:$0xff]
    %v210 = vld [vmem:[#allocation8 + $0xa8] sm:$0xff]
    %v211 = vld [vmem:[#allocation8 + $0xb0] sm:$0xff]
    %v212 = vld [vmem:[#allocation8 + $0xb8] sm:$0xff]
    %v213 = vld [vmem:[#allocation8 + $0xc0] sm:$0xff]
    %v214 = vld [vmem:[#allocation8 + $0xc8] sm:$0xff]
    %v215 = vld [vmem:[#allocation8 + $0xd0] sm:$0xff]
    %v216 = vld [vmem:[#allocation8 + $0xd8] sm:$0xff]
    %v217 = vld [vmem:[#allocation8 + $0xe0] sm:$0xff]
    %v218 = vld [vmem:[#allocation8 + $0xe8] sm:$0xff]
    %v219 = vld [vmem:[#allocation8 + $0xf0] sm:$0xff]
    %v220 = vld [vmem:[#allocation8 + $0xf8] sm:$0xff]
    %v221 = vld [vmem:[#allocation10] sm:$0x3]
    %v223 = vlaneseq
    %v224 = vshrl.u32 %v223, 7
    %v225 = vsub.s32 0, %v224
    %v226 = vrot.slane %v221, %v225
    %v227 = vlaneseq
    %v228 = vshrl.u32 %v227, 7
    %v229 = vsub.s32 1, %v228
    %v230 = vrot.slane %v221, %v229
    %v265 = vunpack.c.l.b16 %v189
    %v266 = vunpack.c.h.b16 %v189
    %v267 = vunpack.c.l.b16 %v190
    %v268 = vunpack.c.h.b16 %v190
    %v269 = vunpack.c.l.b16 %v191
    %v270 = vunpack.c.h.b16 %v191
    %v271 = vunpack.c.l.b16 %v192
    %v272 = vunpack.c.h.b16 %v192
    %v273 = vunpack.c.l.b16 %v193
    %v274 = vunpack.c.h.b16 %v193
    %v275 = vunpack.c.l.b16 %v194
    %v276 = vunpack.c.h.b16 %v194
    %v277 = vunpack.c.l.b16 %v195
    %v278 = vunpack.c.h.b16 %v195
    %v279 = vunpack.c.l.b16 %v196
    %v280 = vunpack.c.h.b16 %v196
    %v281 = vunpack.c.l.b16 %v197
    %v282 = vunpack.c.h.b16 %v197
    %v283 = vunpack.c.l.b16 %v198
    %v284 = vunpack.c.h.b16 %v198
    %v285 = vunpack.c.l.b16 %v199
    %v286 = vunpack.c.h.b16 %v199
    %v287 = vunpack.c.l.b16 %v200
    %v288 = vunpack.c.h.b16 %v200
    %v289 = vunpack.c.l.b16 %v201
    %v290 = vunpack.c.h.b16 %v201
    %v291 = vunpack.c.l.b16 %v202
    %v292 = vunpack.c.h.b16 %v202
    %v293 = vunpack.c.l.b16 %v203
    %v294 = vunpack.c.h.b16 %v203
    %v295 = vunpack.c.l.b16 %v204
    %v296 = vunpack.c.h.b16 %v204
    %v297 = vunpack.c.l.b16 %v205
    %v298 = vunpack.c.h.b16 %v205
    %v299 = vunpack.c.l.b16 %v206
    %v300 = vunpack.c.h.b16 %v206
    %v301 = vunpack.c.l.b16 %v207
    %v302 = vunpack.c.h.b16 %v207
    %v303 = vunpack.c.l.b16 %v208
    %v304 = vunpack.c.h.b16 %v208
    %v305 = vunpack.c.l.b16 %v209
    %v306 = vunpack.c.h.b16 %v209
    %v307 = vunpack.c.l.b16 %v210
    %v308 = vunpack.c.h.b16 %v210
    %v309 = vunpack.c.l.b16 %v211
    %v310 = vunpack.c.h.b16 %v211
    %v311 = vunpack.c.l.b16 %v212
    %v312 = vunpack.c.h.b16 %v212
    %v313 = vunpack.c.l.b16 %v213
    %v314 = vunpack.c.h.b16 %v213
    %v315 = vunpack.c.l.b16 %v214
    %v316 = vunpack.c.h.b16 %v214
    %v317 = vunpack.c.l.b16 %v215
    %v318 = vunpack.c.h.b16 %v215
    %v319 = vunpack.c.l.b16 %v216
    %v320 = vunpack.c.h.b16 %v216
    %v321 = vunpack.c.l.b16 %v217
    %v322 = vunpack.c.h.b16 %v217
    %v323 = vunpack.c.l.b16 %v218
    %v324 = vunpack.c.h.b16 %v218
    %v325 = vunpack.c.l.b16 %v219
    %v326 = vunpack.c.h.b16 %v219
    %v327 = vunpack.c.l.b16 %v220
    %v328 = vunpack.c.h.b16 %v220
    %v329 = vpack.c.b16 %v267, %v265
    %v330 = vpack.c.b16 %v268, %v266
    %v331 = vpack.c.b16 %v271, %v269
    %v332 = vpack.c.b16 %v272, %v270
    %v333 = vpack.c.b16 %v275, %v273
    %v334 = vpack.c.b16 %v276, %v274
    %v335 = vpack.c.b16 %v279, %v277
    %v336 = vpack.c.b16 %v280, %v278
    %v337 = vpack.c.b16 %v283, %v281
    %v338 = vpack.c.b16 %v284, %v282
    %v339 = vpack.c.b16 %v287, %v285
    %v340 = vpack.c.b16 %v288, %v286
    %v341 = vpack.c.b16 %v291, %v289
    %v342 = vpack.c.b16 %v292, %v290
    %v343 = vpack.c.b16 %v295, %v293
    %v344 = vpack.c.b16 %v296, %v294
    %v345 = vpack.c.b16 %v299, %v297
    %v346 = vpack.c.b16 %v300, %v298
    %v347 = vpack.c.b16 %v303, %v301
    %v348 = vpack.c.b16 %v304, %v302
    %v349 = vpack.c.b16 %v307, %v305
    %v350 = vpack.c.b16 %v308, %v306
    %v351 = vpack.c.b16 %v311, %v309
    %v352 = vpack.c.b16 %v312, %v310
    %v353 = vpack.c.b16 %v315, %v313
    %v354 = vpack.c.b16 %v316, %v314
    %v355 = vpack.c.b16 %v319, %v317
    %v356 = vpack.c.b16 %v320, %v318
    %v357 = vpack.c.b16 %v323, %v321
    %v358 = vpack.c.b16 %v324, %v322
    %v359 = vpack.c.b16 %v327, %v325
    %v360 = vpack.c.b16 %v328, %v326
    %393 = vmatprep.subr.bf16.mxu0 %v330
    %394 = vmatpush1.bf16.msra.mxu0 %v329
    %395 = vmatprep.subr.bf16.mxu0 %v332
    %396 = vmatpush1.bf16.msra.mxu0 %v331
    %397 = vmatprep.subr.bf16.mxu0 %v334
    %398 = vmatpush1.bf16.msra.mxu0 %v333
    %399 = vmatprep.subr.bf16.mxu0 %v336
    %400 = vmatpush1.bf16.msra.mxu0 %v335
    %401 = vmatprep.subr.bf16.mxu0 %v338
    %402 = vmatpush1.bf16.msra.mxu0 %v337
    %403 = vmatprep.subr.bf16.mxu0 %v340
    %404 = vmatpush1.bf16.msra.mxu0 %v339
    %405 = vmatprep.subr.bf16.mxu0 %v342
    %406 = vmatpush1.bf16.msra.mxu0 %v341
    %407 = vmatprep.subr.bf16.mxu0 %v344
    %408 = vmatpush1.bf16.msra.mxu0 %v343
    %409 = vmatprep.subr.bf16.mxu0 %v346
    %410 = vmatpush1.bf16.msra.mxu0 %v345
    %411 = vmatprep.subr.bf16.mxu0 %v348
    %412 = vmatpush1.bf16.msra.mxu0 %v347
    %413 = vmatprep.subr.bf16.mxu0 %v350
    %414 = vmatpush1.bf16.msra.mxu0 %v349
    %415 = vmatprep.subr.bf16.mxu0 %v352
    %416 = vmatpush1.bf16.msra.mxu0 %v351
    %417 = vmatprep.subr.bf16.mxu0 %v354
    %418 = vmatpush1.bf16.msra.mxu0 %v353
    %419 = vmatprep.subr.bf16.mxu0 %v356
    %420 = vmatpush1.bf16.msra.mxu0 %v355
    %421 = vmatprep.subr.bf16.mxu0 %v358
    %422 = vmatpush1.bf16.msra.mxu0 %v357
    %423 = vmatprep.subr.bf16.mxu0 %v360
    %424 = vmatpush1.bf16.msra.mxu0 %v359
    %425 = vmatprep.mubr.bf16.mxu0 %v188
    %426 = vmatmul.mubr.bf16.gmra.mrb[0].mxu0 %v187
    %v427 = vpop.f32.mrb[0].mxu0
    %v428 = vadd.f32 %v226, %v427
    %v429 = vpop.f32.mrb[0].mxu0
    %v430 = vadd.f32 %v230, %v429
    %v431 = vpop.f32.mrb[0].mxu0
    %v432 = vpop.f32.mrb[0].mxu0
    %433 = vdwg.mxu0
    %v434 = vmax.f32 %v428, 0.0
    %v435 = vmax.f32 %v430, 0.0
    %v436 = vpack.c.bf16 %v434, %v434
    %v437 = vpack.c.bf16 %v435, %v435
    %v438 = vld [vmem:[#allocation11] sm:$0xf]
    %v439 = vld [vmem:[#allocation11 + $0x4] sm:$0xf]
    %v440 = vld [vmem:[#allocation11 + $0x8] sm:$0xf]
    %v441 = vld [vmem:[#allocation11 + $0xc] sm:$0xf]
    %v442 = vld [vmem:[#allocation11 + $0x10] sm:$0xf]
    %v443 = vld [vmem:[#allocation11 + $0x14] sm:$0xf]
    %v444 = vld [vmem:[#allocation11 + $0x18] sm:$0xf]
    %v445 = vld [vmem:[#allocation11 + $0x1c] sm:$0xf]
    %v446 = vld [vmem:[#allocation11 + $0x20] sm:$0xf]
    %v447 = vld [vmem:[#allocation11 + $0x24] sm:$0xf]
    %v448 = vld [vmem:[#allocation11 + $0x28] sm:$0xf]
    %v449 = vld [vmem:[#allocation11 + $0x2c] sm:$0xf]
    %v450 = vld [vmem:[#allocation11 + $0x30] sm:$0xf]
    %v451 = vld [vmem:[#allocation11 + $0x34] sm:$0xf]
    %v452 = vld [vmem:[#allocation11 + $0x38] sm:$0xf]
    %v453 = vld [vmem:[#allocation11 + $0x3c] sm:$0xf]
    %v454 = vld [vmem:[#allocation11 + $0x40] sm:$0xf]
    %v455 = vld [vmem:[#allocation11 + $0x44] sm:$0xf]
    %v456 = vld [vmem:[#allocation11 + $0x48] sm:$0xf]
    %v457 = vld [vmem:[#allocation11 + $0x4c] sm:$0xf]
    %v458 = vld [vmem:[#allocation11 + $0x50] sm:$0xf]
    %v459 = vld [vmem:[#allocation11 + $0x54] sm:$0xf]
    %v460 = vld [vmem:[#allocation11 + $0x58] sm:$0xf]
    %v461 = vld [vmem:[#allocation11 + $0x5c] sm:$0xf]
    %v462 = vld [vmem:[#allocation11 + $0x60] sm:$0xf]
    %v463 = vld [vmem:[#allocation11 + $0x64] sm:$0xf]
    %v464 = vld [vmem:[#allocation11 + $0x68] sm:$0xf]
    %v465 = vld [vmem:[#allocation11 + $0x6c] sm:$0xf]
    %v466 = vld [vmem:[#allocation11 + $0x70] sm:$0xf]
    %v467 = vld [vmem:[#allocation11 + $0x74] sm:$0xf]
    %v468 = vld [vmem:[#allocation11 + $0x78] sm:$0xf]
    %v469 = vld [vmem:[#allocation11 + $0x7c] sm:$0xf]
    %v470 = vld [vmem:[#allocation13] sm:$0x1]
    %v472 = vlaneseq
    %v473 = vshrl.u32 %v472, 7
    %v474 = vsub.s32 0, %v473
    %v475 = vrot.slane %v470, %v474
    %v509 = vunpack.c.l.b16 %v438
    %v510 = vunpack.c.l.b16 %v439
    %v511 = vunpack.c.l.b16 %v440
    %v512 = vunpack.c.l.b16 %v441
    %v513 = vunpack.c.l.b16 %v442
    %v514 = vunpack.c.l.b16 %v443
    %v515 = vunpack.c.l.b16 %v444
    %v516 = vunpack.c.l.b16 %v445
    %v517 = vunpack.c.l.b16 %v446
    %v518 = vunpack.c.l.b16 %v447
    %v519 = vunpack.c.l.b16 %v448
    %v520 = vunpack.c.l.b16 %v449
    %v521 = vunpack.c.l.b16 %v450
    %v522 = vunpack.c.l.b16 %v451
    %v523 = vunpack.c.l.b16 %v452
    %v524 = vunpack.c.l.b16 %v453
    %v525 = vunpack.c.l.b16 %v454
    %v526 = vunpack.c.l.b16 %v455
    %v527 = vunpack.c.l.b16 %v456
    %v528 = vunpack.c.l.b16 %v457
    %v529 = vunpack.c.l.b16 %v458
    %v530 = vunpack.c.l.b16 %v459
    %v531 = vunpack.c.l.b16 %v460
    %v532 = vunpack.c.l.b16 %v461
    %v533 = vunpack.c.l.b16 %v462
    %v534 = vunpack.c.l.b16 %v463
    %v535 = vunpack.c.l.b16 %v464
    %v536 = vunpack.c.l.b16 %v465
    %v537 = vunpack.c.l.b16 %v466
    %v538 = vunpack.c.l.b16 %v467
    %v539 = vunpack.c.l.b16 %v468
    %v540 = vunpack.c.l.b16 %v469
    %v541 = vpack.c.b16 %v510, %v509
    %v542 = vpack.c.b16 %v512, %v511
    %v543 = vpack.c.b16 %v514, %v513
    %v544 = vpack.c.b16 %v516, %v515
    %v545 = vpack.c.b16 %v518, %v517
    %v546 = vpack.c.b16 %v520, %v519
    %v547 = vpack.c.b16 %v522, %v521
    %v548 = vpack.c.b16 %v524, %v523
    %v549 = vpack.c.b16 %v526, %v525
    %v550 = vpack.c.b16 %v528, %v527
    %v551 = vpack.c.b16 %v530, %v529
    %v552 = vpack.c.b16 %v532, %v531
    %v553 = vpack.c.b16 %v534, %v533
    %v554 = vpack.c.b16 %v536, %v535
    %v555 = vpack.c.b16 %v538, %v537
    %v556 = vpack.c.b16 %v540, %v539
    %573 = vmatprep.subr.bf16.mxu0 0
    %574 = vmatpush1.bf16.msra.mxu0 %v541
    %575 = vmatprep.subr.bf16.mxu0 0
    %576 = vmatpush1.bf16.msra.mxu0 %v542
    %577 = vmatprep.subr.bf16.mxu0 0
    %578 = vmatpush1.bf16.msra.mxu0 %v543
    %579 = vmatprep.subr.bf16.mxu0 0
    %580 = vmatpush1.bf16.msra.mxu0 %v544
    %581 = vmatprep.subr.bf16.mxu0 0
    %582 = vmatpush1.bf16.msra.mxu0 %v545
    %583 = vmatprep.subr.bf16.mxu0 0
    %584 = vmatpush1.bf16.msra.mxu0 %v546
    %585 = vmatprep.subr.bf16.mxu0 0
    %586 = vmatpush1.bf16.msra.mxu0 %v547
    %587 = vmatprep.subr.bf16.mxu0 0
    %588 = vmatpush1.bf16.msra.mxu0 %v548
    %589 = vmatprep.subr.bf16.mxu0 0
    %590 = vmatpush1.bf16.msra.mxu0 %v549
    %591 = vmatprep.subr.bf16.mxu0 0
    %592 = vmatpush1.bf16.msra.mxu0 %v550
    %593 = vmatprep.subr.bf16.mxu0 0
    %594 = vmatpush1.bf16.msra.mxu0 %v551
    %595 = vmatprep.subr.bf16.mxu0 0
    %596 = vmatpush1.bf16.msra.mxu0 %v552
    %597 = vmatprep.subr.bf16.mxu0 0
    %598 = vmatpush1.bf16.msra.mxu0 %v553
    %599 = vmatprep.subr.bf16.mxu0 0
    %600 = vmatpush1.bf16.msra.mxu0 %v554
    %601 = vmatprep.subr.bf16.mxu0 0
    %602 = vmatpush1.bf16.msra.mxu0 %v555
    %603 = vmatprep.subr.bf16.mxu0 0
    %604 = vmatpush1.bf16.msra.mxu0 %v556
    %605 = vmatprep.mubr.bf16.mxu0 %v437
    %606 = vmatmul.mubr.bf16.gmra.mrb[0].mxu0 %v436
    %v607 = vpop.f32.mrb[0].mxu0
    %v608 = vadd.f32 %v475, %v607
    %v609 = vpop.f32.mrb[0].mxu0
    %v610 = vpop.f32.mrb[0].mxu0
    %v611 = vpop.f32.mrb[0].mxu0
    %612 = vdwg.mxu0
    %v613 = vtanh.pop %v608
    %v614 = vmax.f32 %v608, -20.0
    %v615 = vmin.f32 %v614, 2.0
    %v616 = vmul.f32 %v615, 1.442695
    %v617 = vpow.pop %v616
    %v618 = vlaneseq
    %v619 = vand.u32 %v618, 127
    %vm620 = vcmp.lt.s32.totalorder %v619, 8
    %v621 = vsel %vm620, %v613, %v617
    %622 = vst.msk [vmem:[#allocation14] sm:$0xff] %vm140, %v621
    // Predicated region
    $region58: #{tpu_custom_call.1} parent=1 // pred_check
      _
    $region59: #{tpu_custom_call.1} parent=1 // pred_check_branch
      %624 = sbr.rel (0) target = $region61
    $region60: #{tpu_custom_call.1} parent=1 // pred_region
      %s626 = ssub.s32 128, 128
      %627 = vsyncadd [#allocation4], %s626
      %s629 = sshll.u32 [#allocation14], 4
      %s630 = int_to_ptr.vmem [resolvable:$true] %s629
      %632 = dma.vmem_to_hbm [thread:$0]  %s630, 128, %s7, [#allocation4]
    $region61: #{tpu_custom_call.1} parent=1 // pred_fallthru
      _
    // Predicated region
    $region62: #{tpu_custom_call.1} parent=1 // pred_check
      _
    $region63: #{tpu_custom_call.1} parent=1 // pred_check_branch
      %634 = sbr.rel (0) target = $region65
    $region64: #{tpu_custom_call.1} parent=1 // pred_region
      %635 = dma.done [#allocation4], 128
    $region65: #{tpu_custom_call.1} parent=1 // pred_fallthru
      _
    %636 = vsyncpa [#allocation3], 1
    %637 = vsyncpa [#allocation6], 1
    %638 = vsyncpa [#allocation9], 1
    %639 = vsyncpa [#allocation12], 1
    %640 = vsyncpa [#allocation4], 1

</llo_original>
